<compile_context>
chip_gen: v6e
topology: v6e:2x2x1
jax: 0.10.0
libtpu: 0.0.40
codegen_flags: <defaults>
</compile_context>

<pallas_src>
import functools

import jax
import jax.numpy as jnp
from jax.experimental import pallas as pl
from jax.experimental.pallas import tpu as pltpu


def lstm_chunk_kernel(xg_ref, whh_t_ref, hs_ref, h_sc, c_sc, *,
                      chunk_t, hidden, unroll):
    """Run `chunk_t` LSTM steps over a time-major chunk resident in VMEM.

    xg_ref    : (chunk_t, B, 4H)  precomputed x @ W_ih^T + (b_ih + b_hh)
    whh_t_ref : (H, 4H)           recurrent weights (pre-transposed), gates i,f,g,o
    hs_ref    : (chunk_t, B, H)   hidden states for this chunk (one slab per chunk)
    h_sc,c_sc : (B, H) f32        recurrent state (VMEM scratch, persists over grid)
    """
    H = hidden
    c_idx = pl.program_id(0)

    @pl.when(c_idx == 0)
    def _():
        h_sc[...] = jnp.zeros_like(h_sc)
        c_sc[...] = jnp.zeros_like(c_sc)

    whh_t = whh_t_ref[...]   # hoist the weight load out of the recurrence

    def sigmoid(z):
        # sigmoid(z) == 0.5*(tanh(z/2)+1): single EUP push instead of exp+recip.
        return 0.5 * (jnp.tanh(0.5 * z) + 1.0)

    def step(t, carry):
        h, c = carry
        gates = xg_ref[t] + jnp.dot(h, whh_t,
                                    preferred_element_type=jnp.float32)  # (B, 4H)
        i_g = sigmoid(gates[:, 0 * H:1 * H])
        f_g = sigmoid(gates[:, 1 * H:2 * H])
        g_g = jnp.tanh(gates[:, 2 * H:3 * H])
        o_g = sigmoid(gates[:, 3 * H:4 * H])
        c_new = f_g * c + i_g * g_g
        h_new = o_g * jnp.tanh(c_new)
        hs_ref[t] = h_new
        return (h_new, c_new)

    h_fin, c_fin = jax.lax.fori_loop(0, chunk_t, step,
                                     (h_sc[...], c_sc[...]), unroll=unroll)
    h_sc[...] = h_fin
    c_sc[...] = c_fin


def custom_lstm_pallas(x, w_ih, w_hh, b_ih, b_hh, w3, chunk_t=None):
    """x: (B, T) float32. Returns ys: (B, T, O) float32."""
    B, T = x.shape
    four_h, _ = w_ih.shape
    H = four_h // 4
    f32 = jnp.float32

    if chunk_t is None:
        # Largest divisor of T that is <= 64 timesteps per grid step.
        chunk_t = max(d for d in range(1, min(T, 64) + 1) if T % d == 0)
    assert T % chunk_t == 0
    num_chunks = T // chunk_t
    unroll = chunk_t <= 16   # short fixed trip-count -> full unroll for LLO

    # --- Hoisted input-gate GEMM (all timesteps at once), time-major layout ---
    x3 = x.astype(f32)[:, :, None]                                   # (B, T, I)
    bias = (b_ih + b_hh).astype(f32)                                 # (4H,)
    xg = jnp.einsum('bti,gi->tbg', x3, w_ih.astype(f32)) + bias      # (T, B, 4H)
    whh_t = jnp.transpose(w_hh).astype(f32)                          # (H, 4H)

    kernel = functools.partial(lstm_chunk_kernel,
                               chunk_t=chunk_t, hidden=H, unroll=unroll)

    hs = pl.pallas_call(
        kernel,
        out_shape=jax.ShapeDtypeStruct((T, B, H), f32),
        grid_spec=pltpu.PrefetchScalarGridSpec(
            num_scalar_prefetch=0,
            grid=(num_chunks,),
            in_specs=[
                pl.BlockSpec((chunk_t, B, 4 * H), lambda c: (c, 0, 0)),  # xg chunk
                pl.BlockSpec((H, 4 * H), lambda c: (0, 0)),              # W_hh^T (full)
            ],
            out_specs=pl.BlockSpec((chunk_t, B, H), lambda c: (c, 0, 0)),
            scratch_shapes=[
                pltpu.VMEM((B, H), f32),   # h
                pltpu.VMEM((B, H), f32),   # c
            ],
        ),
        compiler_params=pltpu.CompilerParams(
            dimension_semantics=("arbitrary",)),   # sequential recurrence over chunks
    )(xg, whh_t)

    # Final projection fused with the (T,B,*) -> (B,T,*) layout change: one GEMM,
    # no separate output transpose.  ys[b,t,o] = sum_h hs[t,b,h] * w3[o,h]
    ys = jnp.einsum('tbh,oh->bto', hs, w3.astype(f32))
    return ys


def custom_lstm_ref(x, w_ih, w_hh, b_ih, b_hh, w3):
    """Pure-JAX reference matching torch.nn.LSTM (single layer) + matmul."""
    B, T = x.shape
    H = w_hh.shape[1]
    x_tmaj = jnp.transpose(x)[:, :, None]   # (T, B, 1)

    def step(carry, x_t):
        h, c = carry
        gates = x_t @ w_ih.T + b_ih + h @ w_hh.T + b_hh
        i, f, g, o = jnp.split(gates, 4, axis=-1)
        i = jax.nn.sigmoid(i)
        f = jax.nn.sigmoid(f)
        g = jnp.tanh(g)
        o = jax.nn.sigmoid(o)
        c = f * c + i * g
        h = o * jnp.tanh(c)
        return (h, c), h

    init = (jnp.zeros((B, H), jnp.float32), jnp.zeros((B, H), jnp.float32))
    (_, _), hs = jax.lax.scan(step, init, x_tmaj)   # hs: (T, B, H)
    out = jnp.transpose(hs, (1, 0, 2))              # (B, T, H)
    return out @ w3.T                               # (B, T, O)


if __name__ == "__main__":
    # Small shapes implied by the forward: x.unsqueeze(2) => input_size = 1.
    B, T = 2, 8
    input_size, hidden_size, output_size = 1, 32, 4

    key = jax.random.PRNGKey(0)
    kx, k1, k2, k3, k4, k5 = jax.random.split(key, 6)

    # Deterministic parameter init (mimics PyTorch's U(-1/sqrt(H), 1/sqrt(H)) for
    # LSTM weights and rand(O,H)-0.5 for W3).
    bound = 1.0 / jnp.sqrt(jnp.float32(hidden_size))
    w_ih = jax.random.uniform(k1, (4 * hidden_size, input_size),
                              jnp.float32, -bound, bound)
    w_hh = jax.random.uniform(k2, (4 * hidden_size, hidden_size),
                              jnp.float32, -bound, bound)
    b_ih = jax.random.uniform(k3, (4 * hidden_size,), jnp.float32, -bound, bound)
    b_hh = jax.random.uniform(k4, (4 * hidden_size,), jnp.float32, -bound, bound)
    w3 = jax.random.uniform(k5, (output_size, hidden_size), jnp.float32) - 0.5

    x = jax.random.normal(kx, (B, T), jnp.float32)

    ys = custom_lstm_pallas(x, w_ih, w_hh, b_ih, b_hh, w3)
    ys = jax.block_until_ready(ys)

    ys_ref = custom_lstm_ref(x, w_ih, w_hh, b_ih, b_hh, w3)
    assert ys.shape == (B, T, output_size), ys.shape
    assert jnp.allclose(ys, ys_ref, atol=1e-4, rtol=1e-4), (
        float(jnp.max(jnp.abs(ys - ys_ref))))

    print("KERNEL_OK")
</pallas_src>

<mosaic_0001>
module attributes {stable_mosaic.version = 11 : i64} {
  func.func @lstm_chunk_kernel(%arg0: i32, %arg1: memref<8x2x128xf32, #tpu.memory_space<vmem>>, %arg2: memref<32x128xf32, #tpu.memory_space<vmem>>, %arg3: memref<8x2x32xf32, #tpu.memory_space<vmem>>, %arg4: memref<2x32xf32, #tpu.memory_space<vmem>>, %arg5: memref<2x32xf32, #tpu.memory_space<vmem>>) attributes {dimension_semantics = [#tpu.dimension_semantics<arbitrary>], iteration_bounds = array<i64: 1>, scalar_prefetch = 0 : i64, scratch_operands = 2 : i64, tpu.core_type = #tpu.core_type<tc>, window_params = [{transform_indices = @transform_0, window_bounds = array<i64: 8, 2, 128>}, {pipeline_mode = #tpu.pipeline_mode<synchronous>, transform_indices = @transform_1, window_bounds = array<i64: 32, 128>}, {transform_indices = @transform_2, window_bounds = array<i64: 8, 2, 32>}]} {
    %c0_i32 = arith.constant 0 : i32
    %0 = arith.cmpi eq, %arg0, %c0_i32 : i32
    %1 = arith.extui %0 : i1 to i32
    %c0_i32_0 = arith.constant 0 : i32
    %2 = arith.cmpi ne, %1, %c0_i32_0 : i32
    scf.if %2 {
      %cst_122 = arith.constant 0.000000e+00 : f32
      %328 = vector.broadcast %cst_122 : f32 to vector<2x32xf32>
      %c0_123 = arith.constant 0 : index
      %c0_124 = arith.constant 0 : index
      %329 = vector.load %arg4[%c0_123, %c0_124] : memref<2x32xf32, #tpu.memory_space<vmem>>, vector<2x32xf32>
      tpu.vector_store %arg4[%c0_123, %c0_124], %328 {strides = array<i32>} : memref<2x32xf32, #tpu.memory_space<vmem>>, vector<2x32xf32>,
      %cst_125 = arith.constant 0.000000e+00 : f32
      %330 = vector.broadcast %cst_125 : f32 to vector<2x32xf32>
      %c0_126 = arith.constant 0 : index
      %c0_127 = arith.constant 0 : index
      %331 = vector.load %arg5[%c0_126, %c0_127] : memref<2x32xf32, #tpu.memory_space<vmem>>, vector<2x32xf32>
      tpu.vector_store %arg5[%c0_126, %c0_127], %330 {strides = array<i32>} : memref<2x32xf32, #tpu.memory_space<vmem>>, vector<2x32xf32>,
    } else {
    }
    %c0 = arith.constant 0 : index
    %c0_1 = arith.constant 0 : index
    %3 = vector.load %arg2[%c0, %c0_1] : memref<32x128xf32, #tpu.memory_space<vmem>>, vector<32x128xf32>
    %c0_2 = arith.constant 0 : index
    %c0_3 = arith.constant 0 : index
    %4 = vector.load %arg4[%c0_2, %c0_3] : memref<2x32xf32, #tpu.memory_space<vmem>>, vector<2x32xf32>
    %c0_4 = arith.constant 0 : index
    %c0_5 = arith.constant 0 : index
    %5 = vector.load %arg5[%c0_4, %c0_5] : memref<2x32xf32, #tpu.memory_space<vmem>>, vector<2x32xf32>
    %c0_i32_6 = arith.constant 0 : i32
    %6 = arith.index_cast %c0_i32_6 : i32 to index
    %c0_7 = arith.constant 0 : index
    %c0_8 = arith.constant 0 : index
    %7 = vector.load %arg1[%6, %c0_7, %c0_8] : memref<8x2x128xf32, #tpu.memory_space<vmem>>, vector<1x2x128xf32>
    %8 = vector.shape_cast %7 : vector<1x2x128xf32> to vector<2x128xf32>
    %cst = arith.constant dense<0.000000e+00> : vector<2x128xf32>
    %9 = tpu.matmul %4, %3, %cst {dimension_numbers = #tpu.dot_dimension_numbers<[1], [0], [0], [1], [0, 0, 1, 1], [], []>} : vector<2x32xf32>, vector<32x128xf32>, vector<2x128xf32> -> vector<2x128xf32>
    %10 = arith.addf %8, %9 : vector<2x128xf32>
    %11 = vector.extract_strided_slice %10 {offsets = [0, 0], sizes = [2, 32], strides = [1, 1]} : vector<2x128xf32> to vector<2x32xf32>
    %cst_9 = arith.constant 5.000000e-01 : f32
    %12 = vector.broadcast %cst_9 : f32 to vector<2x32xf32>
    %13 = arith.mulf %12, %11 : vector<2x32xf32>
    %14 = math.tanh %13 : vector<2x32xf32>
    %cst_10 = arith.constant 1.000000e+00 : f32
    %15 = vector.broadcast %cst_10 : f32 to vector<2x32xf32>
    %16 = arith.addf %14, %15 : vector<2x32xf32>
    %cst_11 = arith.constant 5.000000e-01 : f32
    %17 = vector.broadcast %cst_11 : f32 to vector<2x32xf32>
    %18 = arith.mulf %17, %16 : vector<2x32xf32>
    %19 = vector.extract_strided_slice %10 {offsets = [0, 32], sizes = [2, 32], strides = [1, 1]} : vector<2x128xf32> to vector<2x32xf32>
    %cst_12 = arith.constant 5.000000e-01 : f32
    %20 = vector.broadcast %cst_12 : f32 to vector<2x32xf32>
    %21 = arith.mulf %20, %19 : vector<2x32xf32>
    %22 = math.tanh %21 : vector<2x32xf32>
    %cst_13 = arith.constant 1.000000e+00 : f32
    %23 = vector.broadcast %cst_13 : f32 to vector<2x32xf32>
    %24 = arith.addf %22, %23 : vector<2x32xf32>
    %cst_14 = arith.constant 5.000000e-01 : f32
    %25 = vector.broadcast %cst_14 : f32 to vector<2x32xf32>
    %26 = arith.mulf %25, %24 : vector<2x32xf32>
    %27 = vector.extract_strided_slice %10 {offsets = [0, 64], sizes = [2, 32], strides = [1, 1]} : vector<2x128xf32> to vector<2x32xf32>
    %28 = math.tanh %27 : vector<2x32xf32>
    %29 = vector.extract_strided_slice %10 {offsets = [0, 96], sizes = [2, 32], strides = [1, 1]} : vector<2x128xf32> to vector<2x32xf32>
    %cst_15 = arith.constant 5.000000e-01 : f32
    %30 = vector.broadcast %cst_15 : f32 to vector<2x32xf32>
    %31 = arith.mulf %30, %29 : vector<2x32xf32>
    %32 = math.tanh %31 : vector<2x32xf32>
    %cst_16 = arith.constant 1.000000e+00 : f32
    %33 = vector.broadcast %cst_16 : f32 to vector<2x32xf32>
    %34 = arith.addf %32, %33 : vector<2x32xf32>
    %cst_17 = arith.constant 5.000000e-01 : f32
    %35 = vector.broadcast %cst_17 : f32 to vector<2x32xf32>
    %36 = arith.mulf %35, %34 : vector<2x32xf32>
    %37 = arith.mulf %26, %5 : vector<2x32xf32>
    %38 = arith.mulf %18, %28 : vector<2x32xf32>
    %39 = arith.addf %37, %38 : vector<2x32xf32>
    %40 = math.tanh %39 : vector<2x32xf32>
    %41 = arith.mulf %36, %40 : vector<2x32xf32>
    %42 = arith.index_cast %c0_i32_6 : i32 to index
    %c0_18 = arith.constant 0 : index
    %c0_19 = arith.constant 0 : index
    %43 = vector.load %arg3[%42, %c0_18, %c0_19] : memref<8x2x32xf32, #tpu.memory_space<vmem>>, vector<1x2x32xf32>
    %44 = vector.shape_cast %43 : vector<1x2x32xf32> to vector<2x32xf32>
    %45 = vector.shape_cast %41 : vector<2x32xf32> to vector<1x2x32xf32>
    tpu.vector_store %arg3[%42, %c0_18, %c0_19], %45 {strides = array<i32>} : memref<8x2x32xf32, #tpu.memory_space<vmem>>, vector<1x2x32xf32>,
    %c1_i32 = arith.constant 1 : i32
    %46 = arith.index_cast %c1_i32 : i32 to index
    %c0_20 = arith.constant 0 : index
    %c0_21 = arith.constant 0 : index
    %47 = vector.load %arg1[%46, %c0_20, %c0_21] : memref<8x2x128xf32, #tpu.memory_space<vmem>>, vector<1x2x128xf32>
    %48 = vector.shape_cast %47 : vector<1x2x128xf32> to vector<2x128xf32>
    %cst_22 = arith.constant dense<0.000000e+00> : vector<2x128xf32>
    %49 = tpu.matmul %41, %3, %cst_22 {dimension_numbers = #tpu.dot_dimension_numbers<[1], [0], [0], [1], [0, 0, 1, 1], [], []>} : vector<2x32xf32>, vector<32x128xf32>, vector<2x128xf32> -> vector<2x128xf32>
    %50 = arith.addf %48, %49 : vector<2x128xf32>
    %51 = vector.extract_strided_slice %50 {offsets = [0, 0], sizes = [2, 32], strides = [1, 1]} : vector<2x128xf32> to vector<2x32xf32>
    %cst_23 = arith.constant 5.000000e-01 : f32
    %52 = vector.broadcast %cst_23 : f32 to vector<2x32xf32>
    %53 = arith.mulf %52, %51 : vector<2x32xf32>
    %54 = math.tanh %53 : vector<2x32xf32>
    %cst_24 = arith.constant 1.000000e+00 : f32
    %55 = vector.broadcast %cst_24 : f32 to vector<2x32xf32>
    %56 = arith.addf %54, %55 : vector<2x32xf32>
    %cst_25 = arith.constant 5.000000e-01 : f32
    %57 = vector.broadcast %cst_25 : f32 to vector<2x32xf32>
    %58 = arith.mulf %57, %56 : vector<2x32xf32>
    %59 = vector.extract_strided_slice %50 {offsets = [0, 32], sizes = [2, 32], strides = [1, 1]} : vector<2x128xf32> to vector<2x32xf32>
    %cst_26 = arith.constant 5.000000e-01 : f32
    %60 = vector.broadcast %cst_26 : f32 to vector<2x32xf32>
    %61 = arith.mulf %60, %59 : vector<2x32xf32>
    %62 = math.tanh %61 : vector<2x32xf32>
    %cst_27 = arith.constant 1.000000e+00 : f32
    %63 = vector.broadcast %cst_27 : f32 to vector<2x32xf32>
    %64 = arith.addf %62, %63 : vector<2x32xf32>
    %cst_28 = arith.constant 5.000000e-01 : f32
    %65 = vector.broadcast %cst_28 : f32 to vector<2x32xf32>
    %66 = arith.mulf %65, %64 : vector<2x32xf32>
    %67 = vector.extract_strided_slice %50 {offsets = [0, 64], sizes = [2, 32], strides = [1, 1]} : vector<2x128xf32> to vector<2x32xf32>
    %68 = math.tanh %67 : vector<2x32xf32>
    %69 = vector.extract_strided_slice %50 {offsets = [0, 96], sizes = [2, 32], strides = [1, 1]} : vector<2x128xf32> to vector<2x32xf32>
    %cst_29 = arith.constant 5.000000e-01 : f32
    %70 = vector.broadcast %cst_29 : f32 to vector<2x32xf32>
    %71 = arith.mulf %70, %69 : vector<2x32xf32>
    %72 = math.tanh %71 : vector<2x32xf32>
    %cst_30 = arith.constant 1.000000e+00 : f32
    %73 = vector.broadcast %cst_30 : f32 to vector<2x32xf32>
    %74 = arith.addf %72, %73 : vector<2x32xf32>
    %cst_31 = arith.constant 5.000000e-01 : f32
    %75 = vector.broadcast %cst_31 : f32 to vector<2x32xf32>
    %76 = arith.mulf %75, %74 : vector<2x32xf32>
    %77 = arith.mulf %66, %39 : vector<2x32xf32>
    %78 = arith.mulf %58, %68 : vector<2x32xf32>
    %79 = arith.addf %77, %78 : vector<2x32xf32>
    %80 = math.tanh %79 : vector<2x32xf32>
    %81 = arith.mulf %76, %80 : vector<2x32xf32>
    %82 = arith.index_cast %c1_i32 : i32 to index
    %c0_32 = arith.constant 0 : index
    %c0_33 = arith.constant 0 : index
    %83 = vector.load %arg3[%82, %c0_32, %c0_33] : memref<8x2x32xf32, #tpu.memory_space<vmem>>, vector<1x2x32xf32>
    %84 = vector.shape_cast %83 : vector<1x2x32xf32> to vector<2x32xf32>
    %85 = vector.shape_cast %81 : vector<2x32xf32> to vector<1x2x32xf32>
    tpu.vector_store %arg3[%82, %c0_32, %c0_33], %85 {strides = array<i32>} : memref<8x2x32xf32, #tpu.memory_space<vmem>>, vector<1x2x32xf32>,
    %c2_i32 = arith.constant 2 : i32
    %86 = arith.index_cast %c2_i32 : i32 to index
    %c0_34 = arith.constant 0 : index
    %c0_35 = arith.constant 0 : index
    %87 = vector.load %arg1[%86, %c0_34, %c0_35] : memref<8x2x128xf32, #tpu.memory_space<vmem>>, vector<1x2x128xf32>
    %88 = vector.shape_cast %87 : vector<1x2x128xf32> to vector<2x128xf32>
    %cst_36 = arith.constant dense<0.000000e+00> : vector<2x128xf32>
    %89 = tpu.matmul %81, %3, %cst_36 {dimension_numbers = #tpu.dot_dimension_numbers<[1], [0], [0], [1], [0, 0, 1, 1], [], []>} : vector<2x32xf32>, vector<32x128xf32>, vector<2x128xf32> -> vector<2x128xf32>
    %90 = arith.addf %88, %89 : vector<2x128xf32>
    %91 = vector.extract_strided_slice %90 {offsets = [0, 0], sizes = [2, 32], strides = [1, 1]} : vector<2x128xf32> to vector<2x32xf32>
    %cst_37 = arith.constant 5.000000e-01 : f32
    %92 = vector.broadcast %cst_37 : f32 to vector<2x32xf32>
    %93 = arith.mulf %92, %91 : vector<2x32xf32>
    %94 = math.tanh %93 : vector<2x32xf32>
    %cst_38 = arith.constant 1.000000e+00 : f32
    %95 = vector.broadcast %cst_38 : f32 to vector<2x32xf32>
    %96 = arith.addf %94, %95 : vector<2x32xf32>
    %cst_39 = arith.constant 5.000000e-01 : f32
    %97 = vector.broadcast %cst_39 : f32 to vector<2x32xf32>
    %98 = arith.mulf %97, %96 : vector<2x32xf32>
    %99 = vector.extract_strided_slice %90 {offsets = [0, 32], sizes = [2, 32], strides = [1, 1]} : vector<2x128xf32> to vector<2x32xf32>
    %cst_40 = arith.constant 5.000000e-01 : f32
    %100 = vector.broadcast %cst_40 : f32 to vector<2x32xf32>
    %101 = arith.mulf %100, %99 : vector<2x32xf32>
    %102 = math.tanh %101 : vector<2x32xf32>
    %cst_41 = arith.constant 1.000000e+00 : f32
    %103 = vector.broadcast %cst_41 : f32 to vector<2x32xf32>
    %104 = arith.addf %102, %103 : vector<2x32xf32>
    %cst_42 = arith.constant 5.000000e-01 : f32
    %105 = vector.broadcast %cst_42 : f32 to vector<2x32xf32>
    %106 = arith.mulf %105, %104 : vector<2x32xf32>
    %107 = vector.extract_strided_slice %90 {offsets = [0, 64], sizes = [2, 32], strides = [1, 1]} : vector<2x128xf32> to vector<2x32xf32>
    %108 = math.tanh %107 : vector<2x32xf32>
    %109 = vector.extract_strided_slice %90 {offsets = [0, 96], sizes = [2, 32], strides = [1, 1]} : vector<2x128xf32> to vector<2x32xf32>
    %cst_43 = arith.constant 5.000000e-01 : f32
    %110 = vector.broadcast %cst_43 : f32 to vector<2x32xf32>
    %111 = arith.mulf %110, %109 : vector<2x32xf32>
    %112 = math.tanh %111 : vector<2x32xf32>
    %cst_44 = arith.constant 1.000000e+00 : f32
    %113 = vector.broadcast %cst_44 : f32 to vector<2x32xf32>
    %114 = arith.addf %112, %113 : vector<2x32xf32>
    %cst_45 = arith.constant 5.000000e-01 : f32
    %115 = vector.broadcast %cst_45 : f32 to vector<2x32xf32>
    %116 = arith.mulf %115, %114 : vector<2x32xf32>
    %117 = arith.mulf %106, %79 : vector<2x32xf32>
    %118 = arith.mulf %98, %108 : vector<2x32xf32>
    %119 = arith.addf %117, %118 : vector<2x32xf32>
    %120 = math.tanh %119 : vector<2x32xf32>
    %121 = arith.mulf %116, %120 : vector<2x32xf32>
    %122 = arith.index_cast %c2_i32 : i32 to index
    %c0_46 = arith.constant 0 : index
    %c0_47 = arith.constant 0 : index
    %123 = vector.load %arg3[%122, %c0_46, %c0_47] : memref<8x2x32xf32, #tpu.memory_space<vmem>>, vector<1x2x32xf32>
    %124 = vector.shape_cast %123 : vector<1x2x32xf32> to vector<2x32xf32>
    %125 = vector.shape_cast %121 : vector<2x32xf32> to vector<1x2x32xf32>
    tpu.vector_store %arg3[%122, %c0_46, %c0_47], %125 {strides = array<i32>} : memref<8x2x32xf32, #tpu.memory_space<vmem>>, vector<1x2x32xf32>,
    %c3_i32 = arith.constant 3 : i32
    %126 = arith.index_cast %c3_i32 : i32 to index
    %c0_48 = arith.constant 0 : index
    %c0_49 = arith.constant 0 : index
    %127 = vector.load %arg1[%126, %c0_48, %c0_49] : memref<8x2x128xf32, #tpu.memory_space<vmem>>, vector<1x2x128xf32>
    %128 = vector.shape_cast %127 : vector<1x2x128xf32> to vector<2x128xf32>
    %cst_50 = arith.constant dense<0.000000e+00> : vector<2x128xf32>
    %129 = tpu.matmul %121, %3, %cst_50 {dimension_numbers = #tpu.dot_dimension_numbers<[1], [0], [0], [1], [0, 0, 1, 1], [], []>} : vector<2x32xf32>, vector<32x128xf32>, vector<2x128xf32> -> vector<2x128xf32>
    %130 = arith.addf %128, %129 : vector<2x128xf32>
    %131 = vector.extract_strided_slice %130 {offsets = [0, 0], sizes = [2, 32], strides = [1, 1]} : vector<2x128xf32> to vector<2x32xf32>
    %cst_51 = arith.constant 5.000000e-01 : f32
    %132 = vector.broadcast %cst_51 : f32 to vector<2x32xf32>
    %133 = arith.mulf %132, %131 : vector<2x32xf32>
    %134 = math.tanh %133 : vector<2x32xf32>
    %cst_52 = arith.constant 1.000000e+00 : f32
    %135 = vector.broadcast %cst_52 : f32 to vector<2x32xf32>
    %136 = arith.addf %134, %135 : vector<2x32xf32>
    %cst_53 = arith.constant 5.000000e-01 : f32
    %137 = vector.broadcast %cst_53 : f32 to vector<2x32xf32>
    %138 = arith.mulf %137, %136 : vector<2x32xf32>
    %139 = vector.extract_strided_slice %130 {offsets = [0, 32], sizes = [2, 32], strides = [1, 1]} : vector<2x128xf32> to vector<2x32xf32>
    %cst_54 = arith.constant 5.000000e-01 : f32
    %140 = vector.broadcast %cst_54 : f32 to vector<2x32xf32>
    %141 = arith.mulf %140, %139 : vector<2x32xf32>
    %142 = math.tanh %141 : vector<2x32xf32>
    %cst_55 = arith.constant 1.000000e+00 : f32
    %143 = vector.broadcast %cst_55 : f32 to vector<2x32xf32>
    %144 = arith.addf %142, %143 : vector<2x32xf32>
    %cst_56 = arith.constant 5.000000e-01 : f32
    %145 = vector.broadcast %cst_56 : f32 to vector<2x32xf32>
    %146 = arith.mulf %145, %144 : vector<2x32xf32>
    %147 = vector.extract_strided_slice %130 {offsets = [0, 64], sizes = [2, 32], strides = [1, 1]} : vector<2x128xf32> to vector<2x32xf32>
    %148 = math.tanh %147 : vector<2x32xf32>
    %149 = vector.extract_strided_slice %130 {offsets = [0, 96], sizes = [2, 32], strides = [1, 1]} : vector<2x128xf32> to vector<2x32xf32>
    %cst_57 = arith.constant 5.000000e-01 : f32
    %150 = vector.broadcast %cst_57 : f32 to vector<2x32xf32>
    %151 = arith.mulf %150, %149 : vector<2x32xf32>
    %152 = math.tanh %151 : vector<2x32xf32>
    %cst_58 = arith.constant 1.000000e+00 : f32
    %153 = vector.broadcast %cst_58 : f32 to vector<2x32xf32>
    %154 = arith.addf %152, %153 : vector<2x32xf32>
    %cst_59 = arith.constant 5.000000e-01 : f32
    %155 = vector.broadcast %cst_59 : f32 to vector<2x32xf32>
    %156 = arith.mulf %155, %154 : vector<2x32xf32>
    %157 = arith.mulf %146, %119 : vector<2x32xf32>
    %158 = arith.mulf %138, %148 : vector<2x32xf32>
    %159 = arith.addf %157, %158 : vector<2x32xf32>
    %160 = math.tanh %159 : vector<2x32xf32>
    %161 = arith.mulf %156, %160 : vector<2x32xf32>
    %162 = arith.index_cast %c3_i32 : i32 to index
    %c0_60 = arith.constant 0 : index
    %c0_61 = arith.constant 0 : index
    %163 = vector.load %arg3[%162, %c0_60, %c0_61] : memref<8x2x32xf32, #tpu.memory_space<vmem>>, vector<1x2x32xf32>
    %164 = vector.shape_cast %163 : vector<1x2x32xf32> to vector<2x32xf32>
    %165 = vector.shape_cast %161 : vector<2x32xf32> to vector<1x2x32xf32>
    tpu.vector_store %arg3[%162, %c0_60, %c0_61], %165 {strides = array<i32>} : memref<8x2x32xf32, #tpu.memory_space<vmem>>, vector<1x2x32xf32>,
    %c4_i32 = arith.constant 4 : i32
    %166 = arith.index_cast %c4_i32 : i32 to index
    %c0_62 = arith.constant 0 : index
    %c0_63 = arith.constant 0 : index
    %167 = vector.load %arg1[%166, %c0_62, %c0_63] : memref<8x2x128xf32, #tpu.memory_space<vmem>>, vector<1x2x128xf32>
    %168 = vector.shape_cast %167 : vector<1x2x128xf32> to vector<2x128xf32>
    %cst_64 = arith.constant dense<0.000000e+00> : vector<2x128xf32>
    %169 = tpu.matmul %161, %3, %cst_64 {dimension_numbers = #tpu.dot_dimension_numbers<[1], [0], [0], [1], [0, 0, 1, 1], [], []>} : vector<2x32xf32>, vector<32x128xf32>, vector<2x128xf32> -> vector<2x128xf32>
    %170 = arith.addf %168, %169 : vector<2x128xf32>
    %171 = vector.extract_strided_slice %170 {offsets = [0, 0], sizes = [2, 32], strides = [1, 1]} : vector<2x128xf32> to vector<2x32xf32>
    %cst_65 = arith.constant 5.000000e-01 : f32
    %172 = vector.broadcast %cst_65 : f32 to vector<2x32xf32>
    %173 = arith.mulf %172, %171 : vector<2x32xf32>
    %174 = math.tanh %173 : vector<2x32xf32>
    %cst_66 = arith.constant 1.000000e+00 : f32
    %175 = vector.broadcast %cst_66 : f32 to vector<2x32xf32>
    %176 = arith.addf %174, %175 : vector<2x32xf32>
    %cst_67 = arith.constant 5.000000e-01 : f32
    %177 = vector.broadcast %cst_67 : f32 to vector<2x32xf32>
    %178 = arith.mulf %177, %176 : vector<2x32xf32>
    %179 = vector.extract_strided_slice %170 {offsets = [0, 32], sizes = [2, 32], strides = [1, 1]} : vector<2x128xf32> to vector<2x32xf32>
    %cst_68 = arith.constant 5.000000e-01 : f32
    %180 = vector.broadcast %cst_68 : f32 to vector<2x32xf32>
    %181 = arith.mulf %180, %179 : vector<2x32xf32>
    %182 = math.tanh %181 : vector<2x32xf32>
    %cst_69 = arith.constant 1.000000e+00 : f32
    %183 = vector.broadcast %cst_69 : f32 to vector<2x32xf32>
    %184 = arith.addf %182, %183 : vector<2x32xf32>
    %cst_70 = arith.constant 5.000000e-01 : f32
    %185 = vector.broadcast %cst_70 : f32 to vector<2x32xf32>
    %186 = arith.mulf %185, %184 : vector<2x32xf32>
    %187 = vector.extract_strided_slice %170 {offsets = [0, 64], sizes = [2, 32], strides = [1, 1]} : vector<2x128xf32> to vector<2x32xf32>
    %188 = math.tanh %187 : vector<2x32xf32>
    %189 = vector.extract_strided_slice %170 {offsets = [0, 96], sizes = [2, 32], strides = [1, 1]} : vector<2x128xf32> to vector<2x32xf32>
    %cst_71 = arith.constant 5.000000e-01 : f32
    %190 = vector.broadcast %cst_71 : f32 to vector<2x32xf32>
    %191 = arith.mulf %190, %189 : vector<2x32xf32>
    %192 = math.tanh %191 : vector<2x32xf32>
    %cst_72 = arith.constant 1.000000e+00 : f32
    %193 = vector.broadcast %cst_72 : f32 to vector<2x32xf32>
    %194 = arith.addf %192, %193 : vector<2x32xf32>
    %cst_73 = arith.constant 5.000000e-01 : f32
    %195 = vector.broadcast %cst_73 : f32 to vector<2x32xf32>
    %196 = arith.mulf %195, %194 : vector<2x32xf32>
    %197 = arith.mulf %186, %159 : vector<2x32xf32>
    %198 = arith.mulf %178, %188 : vector<2x32xf32>
    %199 = arith.addf %197, %198 : vector<2x32xf32>
    %200 = math.tanh %199 : vector<2x32xf32>
    %201 = arith.mulf %196, %200 : vector<2x32xf32>
    %202 = arith.index_cast %c4_i32 : i32 to index
    %c0_74 = arith.constant 0 : index
    %c0_75 = arith.constant 0 : index
    %203 = vector.load %arg3[%202, %c0_74, %c0_75] : memref<8x2x32xf32, #tpu.memory_space<vmem>>, vector<1x2x32xf32>
    %204 = vector.shape_cast %203 : vector<1x2x32xf32> to vector<2x32xf32>
    %205 = vector.shape_cast %201 : vector<2x32xf32> to vector<1x2x32xf32>
    tpu.vector_store %arg3[%202, %c0_74, %c0_75], %205 {strides = array<i32>} : memref<8x2x32xf32, #tpu.memory_space<vmem>>, vector<1x2x32xf32>,
    %c5_i32 = arith.constant 5 : i32
    %206 = arith.index_cast %c5_i32 : i32 to index
    %c0_76 = arith.constant 0 : index
    %c0_77 = arith.constant 0 : index
    %207 = vector.load %arg1[%206, %c0_76, %c0_77] : memref<8x2x128xf32, #tpu.memory_space<vmem>>, vector<1x2x128xf32>
    %208 = vector.shape_cast %207 : vector<1x2x128xf32> to vector<2x128xf32>
    %cst_78 = arith.constant dense<0.000000e+00> : vector<2x128xf32>
    %209 = tpu.matmul %201, %3, %cst_78 {dimension_numbers = #tpu.dot_dimension_numbers<[1], [0], [0], [1], [0, 0, 1, 1], [], []>} : vector<2x32xf32>, vector<32x128xf32>, vector<2x128xf32> -> vector<2x128xf32>
    %210 = arith.addf %208, %209 : vector<2x128xf32>
    %211 = vector.extract_strided_slice %210 {offsets = [0, 0], sizes = [2, 32], strides = [1, 1]} : vector<2x128xf32> to vector<2x32xf32>
    %cst_79 = arith.constant 5.000000e-01 : f32
    %212 = vector.broadcast %cst_79 : f32 to vector<2x32xf32>
    %213 = arith.mulf %212, %211 : vector<2x32xf32>
    %214 = math.tanh %213 : vector<2x32xf32>
    %cst_80 = arith.constant 1.000000e+00 : f32
    %215 = vector.broadcast %cst_80 : f32 to vector<2x32xf32>
    %216 = arith.addf %214, %215 : vector<2x32xf32>
    %cst_81 = arith.constant 5.000000e-01 : f32
    %217 = vector.broadcast %cst_81 : f32 to vector<2x32xf32>
    %218 = arith.mulf %217, %216 : vector<2x32xf32>
    %219 = vector.extract_strided_slice %210 {offsets = [0, 32], sizes = [2, 32], strides = [1, 1]} : vector<2x128xf32> to vector<2x32xf32>
    %cst_82 = arith.constant 5.000000e-01 : f32
    %220 = vector.broadcast %cst_82 : f32 to vector<2x32xf32>
    %221 = arith.mulf %220, %219 : vector<2x32xf32>
    %222 = math.tanh %221 : vector<2x32xf32>
    %cst_83 = arith.constant 1.000000e+00 : f32
    %223 = vector.broadcast %cst_83 : f32 to vector<2x32xf32>
    %224 = arith.addf %222, %223 : vector<2x32xf32>
    %cst_84 = arith.constant 5.000000e-01 : f32
    %225 = vector.broadcast %cst_84 : f32 to vector<2x32xf32>
    %226 = arith.mulf %225, %224 : vector<2x32xf32>
    %227 = vector.extract_strided_slice %210 {offsets = [0, 64], sizes = [2, 32], strides = [1, 1]} : vector<2x128xf32> to vector<2x32xf32>
    %228 = math.tanh %227 : vector<2x32xf32>
    %229 = vector.extract_strided_slice %210 {offsets = [0, 96], sizes = [2, 32], strides = [1, 1]} : vector<2x128xf32> to vector<2x32xf32>
    %cst_85 = arith.constant 5.000000e-01 : f32
    %230 = vector.broadcast %cst_85 : f32 to vector<2x32xf32>
    %231 = arith.mulf %230, %229 : vector<2x32xf32>
    %232 = math.tanh %231 : vector<2x32xf32>
    %cst_86 = arith.constant 1.000000e+00 : f32
    %233 = vector.broadcast %cst_86 : f32 to vector<2x32xf32>
    %234 = arith.addf %232, %233 : vector<2x32xf32>
    %cst_87 = arith.constant 5.000000e-01 : f32
    %235 = vector.broadcast %cst_87 : f32 to vector<2x32xf32>
    %236 = arith.mulf %235, %234 : vector<2x32xf32>
    %237 = arith.mulf %226, %199 : vector<2x32xf32>
    %238 = arith.mulf %218, %228 : vector<2x32xf32>
    %239 = arith.addf %237, %238 : vector<2x32xf32>
    %240 = math.tanh %239 : vector<2x32xf32>
    %241 = arith.mulf %236, %240 : vector<2x32xf32>
    %242 = arith.index_cast %c5_i32 : i32 to index
    %c0_88 = arith.constant 0 : index
    %c0_89 = arith.constant 0 : index
    %243 = vector.load %arg3[%242, %c0_88, %c0_89] : memref<8x2x32xf32, #tpu.memory_space<vmem>>, vector<1x2x32xf32>
    %244 = vector.shape_cast %243 : vector<1x2x32xf32> to vector<2x32xf32>
    %245 = vector.shape_cast %241 : vector<2x32xf32> to vector<1x2x32xf32>
    tpu.vector_store %arg3[%242, %c0_88, %c0_89], %245 {strides = array<i32>} : memref<8x2x32xf32, #tpu.memory_space<vmem>>, vector<1x2x32xf32>,
    %c6_i32 = arith.constant 6 : i32
    %246 = arith.index_cast %c6_i32 : i32 to index
    %c0_90 = arith.constant 0 : index
    %c0_91 = arith.constant 0 : index
    %247 = vector.load %arg1[%246, %c0_90, %c0_91] : memref<8x2x128xf32, #tpu.memory_space<vmem>>, vector<1x2x128xf32>
    %248 = vector.shape_cast %247 : vector<1x2x128xf32> to vector<2x128xf32>
    %cst_92 = arith.constant dense<0.000000e+00> : vector<2x128xf32>
    %249 = tpu.matmul %241, %3, %cst_92 {dimension_numbers = #tpu.dot_dimension_numbers<[1], [0], [0], [1], [0, 0, 1, 1], [], []>} : vector<2x32xf32>, vector<32x128xf32>, vector<2x128xf32> -> vector<2x128xf32>
    %250 = arith.addf %248, %249 : vector<2x128xf32>
    %251 = vector.extract_strided_slice %250 {offsets = [0, 0], sizes = [2, 32], strides = [1, 1]} : vector<2x128xf32> to vector<2x32xf32>
    %cst_93 = arith.constant 5.000000e-01 : f32
    %252 = vector.broadcast %cst_93 : f32 to vector<2x32xf32>
    %253 = arith.mulf %252, %251 : vector<2x32xf32>
    %254 = math.tanh %253 : vector<2x32xf32>
    %cst_94 = arith.constant 1.000000e+00 : f32
    %255 = vector.broadcast %cst_94 : f32 to vector<2x32xf32>
    %256 = arith.addf %254, %255 : vector<2x32xf32>
    %cst_95 = arith.constant 5.000000e-01 : f32
    %257 = vector.broadcast %cst_95 : f32 to vector<2x32xf32>
    %258 = arith.mulf %257, %256 : vector<2x32xf32>
    %259 = vector.extract_strided_slice %250 {offsets = [0, 32], sizes = [2, 32], strides = [1, 1]} : vector<2x128xf32> to vector<2x32xf32>
    %cst_96 = arith.constant 5.000000e-01 : f32
    %260 = vector.broadcast %cst_96 : f32 to vector<2x32xf32>
    %261 = arith.mulf %260, %259 : vector<2x32xf32>
    %262 = math.tanh %261 : vector<2x32xf32>
    %cst_97 = arith.constant 1.000000e+00 : f32
    %263 = vector.broadcast %cst_97 : f32 to vector<2x32xf32>
    %264 = arith.addf %262, %263 : vector<2x32xf32>
    %cst_98 = arith.constant 5.000000e-01 : f32
    %265 = vector.broadcast %cst_98 : f32 to vector<2x32xf32>
    %266 = arith.mulf %265, %264 : vector<2x32xf32>
    %267 = vector.extract_strided_slice %250 {offsets = [0, 64], sizes = [2, 32], strides = [1, 1]} : vector<2x128xf32> to vector<2x32xf32>
    %268 = math.tanh %267 : vector<2x32xf32>
    %269 = vector.extract_strided_slice %250 {offsets = [0, 96], sizes = [2, 32], strides = [1, 1]} : vector<2x128xf32> to vector<2x32xf32>
    %cst_99 = arith.constant 5.000000e-01 : f32
    %270 = vector.broadcast %cst_99 : f32 to vector<2x32xf32>
    %271 = arith.mulf %270, %269 : vector<2x32xf32>
    %272 = math.tanh %271 : vector<2x32xf32>
    %cst_100 = arith.constant 1.000000e+00 : f32
    %273 = vector.broadcast %cst_100 : f32 to vector<2x32xf32>
    %274 = arith.addf %272, %273 : vector<2x32xf32>
    %cst_101 = arith.constant 5.000000e-01 : f32
    %275 = vector.broadcast %cst_101 : f32 to vector<2x32xf32>
    %276 = arith.mulf %275, %274 : vector<2x32xf32>
    %277 = arith.mulf %266, %239 : vector<2x32xf32>
    %278 = arith.mulf %258, %268 : vector<2x32xf32>
    %279 = arith.addf %277, %278 : vector<2x32xf32>
    %280 = math.tanh %279 : vector<2x32xf32>
    %281 = arith.mulf %276, %280 : vector<2x32xf32>
    %282 = arith.index_cast %c6_i32 : i32 to index
    %c0_102 = arith.constant 0 : index
    %c0_103 = arith.constant 0 : index
    %283 = vector.load %arg3[%282, %c0_102, %c0_103] : memref<8x2x32xf32, #tpu.memory_space<vmem>>, vector<1x2x32xf32>
    %284 = vector.shape_cast %283 : vector<1x2x32xf32> to vector<2x32xf32>
    %285 = vector.shape_cast %281 : vector<2x32xf32> to vector<1x2x32xf32>
    tpu.vector_store %arg3[%282, %c0_102, %c0_103], %285 {strides = array<i32>} : memref<8x2x32xf32, #tpu.memory_space<vmem>>, vector<1x2x32xf32>,
    %c7_i32 = arith.constant 7 : i32
    %286 = arith.index_cast %c7_i32 : i32 to index
    %c0_104 = arith.constant 0 : index
    %c0_105 = arith.constant 0 : index
    %287 = vector.load %arg1[%286, %c0_104, %c0_105] : memref<8x2x128xf32, #tpu.memory_space<vmem>>, vector<1x2x128xf32>
    %288 = vector.shape_cast %287 : vector<1x2x128xf32> to vector<2x128xf32>
    %cst_106 = arith.constant dense<0.000000e+00> : vector<2x128xf32>
    %289 = tpu.matmul %281, %3, %cst_106 {dimension_numbers = #tpu.dot_dimension_numbers<[1], [0], [0], [1], [0, 0, 1, 1], [], []>} : vector<2x32xf32>, vector<32x128xf32>, vector<2x128xf32> -> vector<2x128xf32>
    %290 = arith.addf %288, %289 : vector<2x128xf32>
    %291 = vector.extract_strided_slice %290 {offsets = [0, 0], sizes = [2, 32], strides = [1, 1]} : vector<2x128xf32> to vector<2x32xf32>
    %cst_107 = arith.constant 5.000000e-01 : f32
    %292 = vector.broadcast %cst_107 : f32 to vector<2x32xf32>
    %293 = arith.mulf %292, %291 : vector<2x32xf32>
    %294 = math.tanh %293 : vector<2x32xf32>
    %cst_108 = arith.constant 1.000000e+00 : f32
    %295 = vector.broadcast %cst_108 : f32 to vector<2x32xf32>
    %296 = arith.addf %294, %295 : vector<2x32xf32>
    %cst_109 = arith.constant 5.000000e-01 : f32
    %297 = vector.broadcast %cst_109 : f32 to vector<2x32xf32>
    %298 = arith.mulf %297, %296 : vector<2x32xf32>
    %299 = vector.extract_strided_slice %290 {offsets = [0, 32], sizes = [2, 32], strides = [1, 1]} : vector<2x128xf32> to vector<2x32xf32>
    %cst_110 = arith.constant 5.000000e-01 : f32
    %300 = vector.broadcast %cst_110 : f32 to vector<2x32xf32>
    %301 = arith.mulf %300, %299 : vector<2x32xf32>
    %302 = math.tanh %301 : vector<2x32xf32>
    %cst_111 = arith.constant 1.000000e+00 : f32
    %303 = vector.broadcast %cst_111 : f32 to vector<2x32xf32>
    %304 = arith.addf %302, %303 : vector<2x32xf32>
    %cst_112 = arith.constant 5.000000e-01 : f32
    %305 = vector.broadcast %cst_112 : f32 to vector<2x32xf32>
    %306 = arith.mulf %305, %304 : vector<2x32xf32>
    %307 = vector.extract_strided_slice %290 {offsets = [0, 64], sizes = [2, 32], strides = [1, 1]} : vector<2x128xf32> to vector<2x32xf32>
    %308 = math.tanh %307 : vector<2x32xf32>
    %309 = vector.extract_strided_slice %290 {offsets = [0, 96], sizes = [2, 32], strides = [1, 1]} : vector<2x128xf32> to vector<2x32xf32>
    %cst_113 = arith.constant 5.000000e-01 : f32
    %310 = vector.broadcast %cst_113 : f32 to vector<2x32xf32>
    %311 = arith.mulf %310, %309 : vector<2x32xf32>
    %312 = math.tanh %311 : vector<2x32xf32>
    %cst_114 = arith.constant 1.000000e+00 : f32
    %313 = vector.broadcast %cst_114 : f32 to vector<2x32xf32>
    %314 = arith.addf %312, %313 : vector<2x32xf32>
    %cst_115 = arith.constant 5.000000e-01 : f32
    %315 = vector.broadcast %cst_115 : f32 to vector<2x32xf32>
    %316 = arith.mulf %315, %314 : vector<2x32xf32>
    %317 = arith.mulf %306, %279 : vector<2x32xf32>
    %318 = arith.mulf %298, %308 : vector<2x32xf32>
    %319 = arith.addf %317, %318 : vector<2x32xf32>
    %320 = math.tanh %319 : vector<2x32xf32>
    %321 = arith.mulf %316, %320 : vector<2x32xf32>
    %322 = arith.index_cast %c7_i32 : i32 to index
    %c0_116 = arith.constant 0 : index
    %c0_117 = arith.constant 0 : index
    %323 = vector.load %arg3[%322, %c0_116, %c0_117] : memref<8x2x32xf32, #tpu.memory_space<vmem>>, vector<1x2x32xf32>
    %324 = vector.shape_cast %323 : vector<1x2x32xf32> to vector<2x32xf32>
    %325 = vector.shape_cast %321 : vector<2x32xf32> to vector<1x2x32xf32>
    tpu.vector_store %arg3[%322, %c0_116, %c0_117], %325 {strides = array<i32>} : memref<8x2x32xf32, #tpu.memory_space<vmem>>, vector<1x2x32xf32>,
    %c8_i32 = arith.constant 8 : i32
    %c0_118 = arith.constant 0 : index
    %c0_119 = arith.constant 0 : index
    %326 = vector.load %arg4[%c0_118, %c0_119] : memref<2x32xf32, #tpu.memory_space<vmem>>, vector<2x32xf32>
    tpu.vector_store %arg4[%c0_118, %c0_119], %321 {strides = array<i32>} : memref<2x32xf32, #tpu.memory_space<vmem>>, vector<2x32xf32>,
    %c0_120 = arith.constant 0 : index
    %c0_121 = arith.constant 0 : index
    %327 = vector.load %arg5[%c0_120, %c0_121] : memref<2x32xf32, #tpu.memory_space<vmem>>, vector<2x32xf32>
    tpu.vector_store %arg5[%c0_120, %c0_121], %319 {strides = array<i32>} : memref<2x32xf32, #tpu.memory_space<vmem>>, vector<2x32xf32>,
    return
  }
  func.func @transform_0(%arg0: i32) -> (i32, i32, i32) {
    %c0_i32 = arith.constant 0 : i32
    %c0_i32_0 = arith.constant 0 : i32
    %c0_i32_1 = arith.constant 0 : i32
    return %arg0, %c0_i32, %c0_i32_0 : i32, i32, i32
  }
  func.func @transform_1(%arg0: i32) -> (i32, i32) {
    %c0_i32 = arith.constant 0 : i32
    %c0_i32_0 = arith.constant 0 : i32
    %c0_i32_1 = arith.constant 0 : i32
    return %c0_i32, %c0_i32_0 : i32, i32
  }
  func.func @transform_2(%arg0: i32) -> (i32, i32, i32) {
    %c0_i32 = arith.constant 0 : i32
    %c0_i32_0 = arith.constant 0 : i32
    %c0_i32_1 = arith.constant 0 : i32
    return %arg0, %c0_i32, %c0_i32_0 : i32, i32, i32
  }
}

</mosaic_0001>

<llo_original>
// kernel: tpu_custom_call.1
$region0: #{tpu_custom_call.1}
  #allocation0 [shape = 'u32[]', space=smem, size = 0x4, offset = 0x4, fixed_abs, tag = 'smem constant byte address 0x4 - core index']
  #allocation1 [shape = 'u32[144,128]{1,0:T(1,128)}', space=vmem, size = 0x12000, scoped, tag = 'internal scratch']
  #allocation2 [shape = 'f32[2,32]{1,0:T(2,128)}', space=vmem, size = 0x400, scoped, tag = 'scratch operand']
  #allocation3 [shape = 'f32[2,32]{1,0:T(2,128)}', space=vmem, size = 0x400, scoped, tag = 'scratch operand']
  %s0 = inlined_call_operand.hbm [shape: f32[8,2,128], index: 0, kind: input, shape index: {}]
  %s1 = inlined_call_operand.hbm [shape: f32[32,128], index: 1, kind: input, shape index: {}]
  %s2 = inlined_call_operand.hbm [shape: f32[8,2,32], index: 2, kind: output, shape index: {}]
  %s3 = sld [smem:[#allocation0]]
  $region30: #{tpu_custom_call.1} parent=0
    _
  %s5 = ssub.s32 1, %s3
  %s6 = scalar_select 0, %s5, %s3
  $region1: #{tpu_custom_call.1} parent=0
    #allocation4 [shape = 'u8[8192]{0}', space=vmem, size = 0x2000, scoped, tag = 'input window, operand 0, single buffered']
    #allocation5 [shape = 's32[1]{0}', space=sflag, size = 0x4, scoped, tag = 'scoped memory for tpu_custom_call.1']
    #allocation6 [shape = 's32[1]{0}', space=sflag, size = 0x4, scoped, tag = 'scoped memory for tpu_custom_call.1']
    #allocation7 [shape = 'u8[16384]{0}', space=vmem, size = 0x4000, scoped, tag = 'input window, operand 1, single buffered']
    #allocation8 [shape = 's32[1]{0}', space=sflag, size = 0x4, scoped, tag = 'scoped memory for tpu_custom_call.1']
    #allocation9 [shape = 'u8[8192]{0}', space=vmem, size = 0x2000, scoped, tag = 'output window, operand 0, single buffered']
    %7 = vsyncpa [#allocation5], 0
    %8 = vsyncpa [#allocation8], 0
    %9 = vsyncpa [#allocation6], 0
    // Predicated region
    $region2: #{tpu_custom_call.1} parent=1 // pred_check
      _
    $region3: #{tpu_custom_call.1} parent=1 // pred_check_branch
      %11 = sbr.rel (0) target = $region5
    $region4: #{tpu_custom_call.1} parent=1 // pred_region
      %s13 = ssub.s32 256, 256
      %14 = vsyncadd [#allocation5], %s13
      %s15 = sshll.u32 [#allocation4], 4
      %s16 = int_to_ptr.vmem [resolvable:$true] %s15
      %21 = dma.hbm_to_vmem [thread:$0]  %s0, 256, %s16, [#allocation5], 32, 32, 2
    $region5: #{tpu_custom_call.1} parent=1 // pred_fallthru
      _
    // Predicated region
    $region6: #{tpu_custom_call.1} parent=1 // pred_check
      _
    $region7: #{tpu_custom_call.1} parent=1 // pred_check_branch
      %23 = sbr.rel (0) target = $region9
    $region8: #{tpu_custom_call.1} parent=1 // pred_region
      %s25 = ssub.s32 512, 512
      %26 = vsyncadd [#allocation8], %s25
      %s27 = sshll.u32 [#allocation7], 4
      %s28 = int_to_ptr.vmem [resolvable:$true] %s27
      %33 = dma.hbm_to_vmem [thread:$0]  %s1, 512, %s28, [#allocation8], 128, 128, 8
    $region9: #{tpu_custom_call.1} parent=1 // pred_fallthru
      _
    // Predicated region
    $region10: #{tpu_custom_call.1} parent=1 // pred_check
      _
    $region11: #{tpu_custom_call.1} parent=1 // pred_check_branch
      %35 = sbr.rel (0) target = $region13
    $region12: #{tpu_custom_call.1} parent=1 // pred_region
      %36 = dma.done [#allocation5], 256
    $region13: #{tpu_custom_call.1} parent=1 // pred_fallthru
      _
    // Predicated region
    $region14: #{tpu_custom_call.1} parent=1 // pred_check
      _
    $region15: #{tpu_custom_call.1} parent=1 // pred_check_branch
      %38 = sbr.rel (0) target = $region17
    $region16: #{tpu_custom_call.1} parent=1 // pred_region
      %39 = dma.done [#allocation8], 512
    $region17: #{tpu_custom_call.1} parent=1 // pred_fallthru
      _
    %p40 = scmp.eq.s32.totalorder 0, 0
    // Predicated region
    $region18: #{tpu_custom_call.1} parent=1 // pred_check
      %p41 = pneg %p40
    $region19: #{tpu_custom_call.1} parent=1 // pred_check_branch
      %43 = sbr.rel (%p41) target = $region21
    $region20: #{tpu_custom_call.1} parent=1 // pred_region
      %vm44 = vcmask 254976
      %45 = vst.msk [vmem:[#allocation2] sm:$0x3] %vm44, 0.0
      %46 = vst.msk [vmem:[#allocation3] sm:$0x3] %vm44, 0.0
    $region21: #{tpu_custom_call.1} parent=1 // pred_fallthru
      _
    %v47 = vld [vmem:[#allocation7] sm:$0xff]
    %v48 = vld [vmem:[#allocation7 + $0x8] sm:$0xff]
    %v49 = vld [vmem:[#allocation7 + $0x10] sm:$0xff]
    %v50 = vld [vmem:[#allocation7 + $0x18] sm:$0xff]
    %v51 = vld [vmem:[#allocation2] sm:$0x3]
    %v52 = vld [vmem:[#allocation3] sm:$0x3]
    %v53 = vld [vmem:[#allocation4] sm:$0x3]
    %vm54 = vcmask 261120
    %v56 = vsel %vm54, %v51, 0
    %58 = vmatprep.subr.mxu0 0.0
    %59 = vmatpush1.msra.mxu0 0.0
    %60 = vmatprep.subr.mxu0 0.0
    %61 = vmatpush1.msra.mxu0 0.0
    %62 = vmatprep.subr.mxu0 0.0
    %63 = vmatpush1.msra.mxu0 0.0
    %64 = vmatprep.subr.mxu0 0.0
    %65 = vmatpush1.msra.mxu0 0.0
    %66 = vmatprep.subr.mxu0 0.0
    %67 = vmatpush1.msra.mxu0 0.0
    %68 = vmatprep.subr.mxu0 0.0
    %69 = vmatpush1.msra.mxu0 0.0
    %70 = vmatprep.subr.mxu0 0.0
    %71 = vmatpush1.msra.mxu0 0.0
    %72 = vmatprep.subr.mxu0 0.0
    %73 = vmatpush1.msra.mxu0 0.0
    %74 = vmatprep.subr.mxu0 0.0
    %75 = vmatpush1.msra.mxu0 0.0
    %76 = vmatprep.subr.mxu0 0.0
    %77 = vmatpush1.msra.mxu0 0.0
    %78 = vmatprep.subr.mxu0 0.0
    %79 = vmatpush1.msra.mxu0 0.0
    %80 = vmatprep.subr.mxu0 0.0
    %81 = vmatpush1.msra.mxu0 0.0
    %82 = vmatprep.subr.mxu0 0.0
    %83 = vmatpush1.msra.mxu0 %v50
    %84 = vmatprep.subr.mxu0 0.0
    %85 = vmatpush1.msra.mxu0 %v49
    %86 = vmatprep.subr.mxu0 0.0
    %87 = vmatpush1.msra.mxu0 %v48
    %88 = vmatprep.subr.mxu0 0.0
    %89 = vmatpush1.msra.mxu0 %v47
    %90 = vmatprep.subr.mxu0 0.0
    %91 = vmatpush2.msra.mxu0 0.0
    %92 = vmatprep.subr.mxu0 0.0
    %93 = vmatpush2.msra.mxu0 0.0
    %94 = vmatprep.subr.mxu0 0.0
    %95 = vmatpush2.msra.mxu0 0.0
    %96 = vmatprep.subr.mxu0 0.0
    %97 = vmatpush2.msra.mxu0 0.0
    %98 = vmatprep.subr.mxu0 0.0
    %99 = vmatpush2.msra.mxu0 0.0
    %100 = vmatprep.subr.mxu0 0.0
    %101 = vmatpush2.msra.mxu0 0.0
    %102 = vmatprep.subr.mxu0 0.0
    %103 = vmatpush2.msra.mxu0 0.0
    %104 = vmatprep.subr.mxu0 0.0
    %105 = vmatpush2.msra.mxu0 0.0
    %106 = vmatprep.subr.mxu0 0.0
    %107 = vmatpush2.msra.mxu0 0.0
    %108 = vmatprep.subr.mxu0 0.0
    %109 = vmatpush2.msra.mxu0 0.0
    %110 = vmatprep.subr.mxu0 0.0
    %111 = vmatpush2.msra.mxu0 0.0
    %112 = vmatprep.subr.mxu0 0.0
    %113 = vmatpush2.msra.mxu0 0.0
    %114 = vmatprep.subr.mxu0 0.0
    %115 = vmatpush2.msra.mxu0 0.0
    %116 = vmatprep.subr.mxu0 0.0
    %117 = vmatpush2.msra.mxu0 0.0
    %118 = vmatprep.subr.mxu0 0.0
    %119 = vmatpush2.msra.mxu0 0.0
    %120 = vmatprep.subr.mxu0 0.0
    %121 = vmatpush2.msra.mxu0 0.0
    %122 = vmatprep.mubr.f32.mxu0 0.0
    %123 = vmatmul.mubr.f32.gmra.mxu0 %v56
    %v124 = vpop.f32.mrf.mxu0
    %v125 = vadd.f32 0.0, %v124
    %v126 = vpop.f32.mrf.mxu0
    %127 = vdwg.mxu0
    %v128 = vadd.f32 %v53, %v125
    %v129 = vmul.f32 %v128, 0.5
    %v130 = vtanh.pop %v129
    %v131 = vadd.f32 %v130, 1.0
    %v132 = vmul.f32 %v131, 0.5
    %v133 = vtanh.pop %v128
    %135 = vrot.lane.b32.xlu0 %v52, 32
    %v136 = vpop.permute.xlu0 %135
    %v138 = vmul.f32 %v132, %v136
    %140 = vrot.lane.b32.xlu0 %v133, 64
    %v141 = vpop.permute.xlu0 %140
    %v143 = vmul.f32 %v132, %v141
    %145 = vrot.lane.b32.xlu0 %v143, 32
    %v146 = vpop.permute.xlu0 %145
    %v148 = vadd.f32 %v138, %v146
    %v149 = vtanh.pop %v148
    %151 = vrot.lane.b32.xlu0 %v149, 64
    %v152 = vpop.permute.xlu0 %151
    %v154 = vmul.f32 %v132, %v152
    %156 = vrot.lane.b32.xlu0 %v154, 32
    %v157 = vpop.permute.xlu0 %156
    %vm159 = vcmask 254976
    %160 = vst.msk [vmem:[#allocation9] sm:$0x3] %vm159, %v157
    %s161 = scalar_lea.vmem [#allocation4], 2
    %v162 = vld [vmem:[%s161] sm:$0x3]
    %v163 = vsel %vm54, %v157, 0
    %165 = vmatprep.subr.mxu0 0.0
    %166 = vmatpush1.msra.mxu0 0.0
    %167 = vmatprep.subr.mxu0 0.0
    %168 = vmatpush1.msra.mxu0 0.0
    %169 = vmatprep.subr.mxu0 0.0
    %170 = vmatpush1.msra.mxu0 0.0
    %171 = vmatprep.subr.mxu0 0.0
    %172 = vmatpush1.msra.mxu0 0.0
    %173 = vmatprep.subr.mxu0 0.0
    %174 = vmatpush1.msra.mxu0 0.0
    %175 = vmatprep.subr.mxu0 0.0
    %176 = vmatpush1.msra.mxu0 0.0
    %177 = vmatprep.subr.mxu0 0.0
    %178 = vmatpush1.msra.mxu0 0.0
    %179 = vmatprep.subr.mxu0 0.0
    %180 = vmatpush1.msra.mxu0 0.0
    %181 = vmatprep.subr.mxu0 0.0
    %182 = vmatpush1.msra.mxu0 0.0
    %183 = vmatprep.subr.mxu0 0.0
    %184 = vmatpush1.msra.mxu0 0.0
    %185 = vmatprep.subr.mxu0 0.0
    %186 = vmatpush1.msra.mxu0 0.0
    %187 = vmatprep.subr.mxu0 0.0
    %188 = vmatpush1.msra.mxu0 0.0
    %189 = vmatprep.subr.mxu0 0.0
    %190 = vmatpush1.msra.mxu0 %v50
    %191 = vmatprep.subr.mxu0 0.0
    %192 = vmatpush1.msra.mxu0 %v49
    %193 = vmatprep.subr.mxu0 0.0
    %194 = vmatpush1.msra.mxu0 %v48
    %195 = vmatprep.subr.mxu0 0.0
    %196 = vmatpush1.msra.mxu0 %v47
    %197 = vmatprep.subr.mxu0 0.0
    %198 = vmatpush2.msra.mxu0 0.0
    %199 = vmatprep.subr.mxu0 0.0
    %200 = vmatpush2.msra.mxu0 0.0
    %201 = vmatprep.subr.mxu0 0.0
    %202 = vmatpush2.msra.mxu0 0.0
    %203 = vmatprep.subr.mxu0 0.0
    %204 = vmatpush2.msra.mxu0 0.0
    %205 = vmatprep.subr.mxu0 0.0
    %206 = vmatpush2.msra.mxu0 0.0
    %207 = vmatprep.subr.mxu0 0.0
    %208 = vmatpush2.msra.mxu0 0.0
    %209 = vmatprep.subr.mxu0 0.0
    %210 = vmatpush2.msra.mxu0 0.0
    %211 = vmatprep.subr.mxu0 0.0
    %212 = vmatpush2.msra.mxu0 0.0
    %213 = vmatprep.subr.mxu0 0.0
    %214 = vmatpush2.msra.mxu0 0.0
    %215 = vmatprep.subr.mxu0 0.0
    %216 = vmatpush2.msra.mxu0 0.0
    %217 = vmatprep.subr.mxu0 0.0
    %218 = vmatpush2.msra.mxu0 0.0
    %219 = vmatprep.subr.mxu0 0.0
    %220 = vmatpush2.msra.mxu0 0.0
    %221 = vmatprep.subr.mxu0 0.0
    %222 = vmatpush2.msra.mxu0 0.0
    %223 = vmatprep.subr.mxu0 0.0
    %224 = vmatpush2.msra.mxu0 0.0
    %225 = vmatprep.subr.mxu0 0.0
    %226 = vmatpush2.msra.mxu0 0.0
    %227 = vmatprep.subr.mxu0 0.0
    %228 = vmatpush2.msra.mxu0 0.0
    %229 = vmatprep.mubr.f32.mxu0 0.0
    %230 = vmatmul.mubr.f32.gmra.mxu0 %v163
    %v231 = vpop.f32.mrf.mxu0
    %v232 = vadd.f32 0.0, %v231
    %v233 = vpop.f32.mrf.mxu0
    %234 = vdwg.mxu0
    %v235 = vadd.f32 %v162, %v232
    %v236 = vmul.f32 %v235, 0.5
    %v237 = vtanh.pop %v236
    %v238 = vadd.f32 %v237, 1.0
    %v239 = vmul.f32 %v238, 0.5
    %v240 = vtanh.pop %v235
    %v241 = vmul.f32 %v239, %v148
    %243 = vrot.lane.b32.xlu0 %v240, 64
    %v244 = vpop.permute.xlu0 %243
    %v246 = vmul.f32 %v239, %v244
    %248 = vrot.lane.b32.xlu0 %v246, 32
    %v249 = vpop.permute.xlu0 %248
    %v251 = vadd.f32 %v241, %v249
    %v252 = vtanh.pop %v251
    %254 = vrot.lane.b32.xlu0 %v252, 64
    %v255 = vpop.permute.xlu0 %254
    %v257 = vmul.f32 %v239, %v255
    %259 = vrot.lane.b32.xlu0 %v257, 32
    %v260 = vpop.permute.xlu0 %259
    %s262 = scalar_lea.vmem [#allocation9], 2
    %263 = vst.msk [vmem:[%s262] sm:$0x3] %vm159, %v260
    %s264 = scalar_lea.vmem [#allocation4], 4
    %v265 = vld [vmem:[%s264] sm:$0x3]
    %v266 = vsel %vm54, %v260, 0
    %268 = vmatprep.subr.mxu0 0.0
    %269 = vmatpush1.msra.mxu0 0.0
    %270 = vmatprep.subr.mxu0 0.0
    %271 = vmatpush1.msra.mxu0 0.0
    %272 = vmatprep.subr.mxu0 0.0
    %273 = vmatpush1.msra.mxu0 0.0
    %274 = vmatprep.subr.mxu0 0.0
    %275 = vmatpush1.msra.mxu0 0.0
    %276 = vmatprep.subr.mxu0 0.0
    %277 = vmatpush1.msra.mxu0 0.0
    %278 = vmatprep.subr.mxu0 0.0
    %279 = vmatpush1.msra.mxu0 0.0
    %280 = vmatprep.subr.mxu0 0.0
    %281 = vmatpush1.msra.mxu0 0.0
    %282 = vmatprep.subr.mxu0 0.0
    %283 = vmatpush1.msra.mxu0 0.0
    %284 = vmatprep.subr.mxu0 0.0
    %285 = vmatpush1.msra.mxu0 0.0
    %286 = vmatprep.subr.mxu0 0.0
    %287 = vmatpush1.msra.mxu0 0.0
    %288 = vmatprep.subr.mxu0 0.0
    %289 = vmatpush1.msra.mxu0 0.0
    %290 = vmatprep.subr.mxu0 0.0
    %291 = vmatpush1.msra.mxu0 0.0
    %292 = vmatprep.subr.mxu0 0.0
    %293 = vmatpush1.msra.mxu0 %v50
    %294 = vmatprep.subr.mxu0 0.0
    %295 = vmatpush1.msra.mxu0 %v49
    %296 = vmatprep.subr.mxu0 0.0
    %297 = vmatpush1.msra.mxu0 %v48
    %298 = vmatprep.subr.mxu0 0.0
    %299 = vmatpush1.msra.mxu0 %v47
    %300 = vmatprep.subr.mxu0 0.0
    %301 = vmatpush2.msra.mxu0 0.0
    %302 = vmatprep.subr.mxu0 0.0
    %303 = vmatpush2.msra.mxu0 0.0
    %304 = vmatprep.subr.mxu0 0.0
    %305 = vmatpush2.msra.mxu0 0.0
    %306 = vmatprep.subr.mxu0 0.0
    %307 = vmatpush2.msra.mxu0 0.0
    %308 = vmatprep.subr.mxu0 0.0
    %309 = vmatpush2.msra.mxu0 0.0
    %310 = vmatprep.subr.mxu0 0.0
    %311 = vmatpush2.msra.mxu0 0.0
    %312 = vmatprep.subr.mxu0 0.0
    %313 = vmatpush2.msra.mxu0 0.0
    %314 = vmatprep.subr.mxu0 0.0
    %315 = vmatpush2.msra.mxu0 0.0
    %316 = vmatprep.subr.mxu0 0.0
    %317 = vmatpush2.msra.mxu0 0.0
    %318 = vmatprep.subr.mxu0 0.0
    %319 = vmatpush2.msra.mxu0 0.0
    %320 = vmatprep.subr.mxu0 0.0
    %321 = vmatpush2.msra.mxu0 0.0
    %322 = vmatprep.subr.mxu0 0.0
    %323 = vmatpush2.msra.mxu0 0.0
    %324 = vmatprep.subr.mxu0 0.0
    %325 = vmatpush2.msra.mxu0 0.0
    %326 = vmatprep.subr.mxu0 0.0
    %327 = vmatpush2.msra.mxu0 0.0
    %328 = vmatprep.subr.mxu0 0.0
    %329 = vmatpush2.msra.mxu0 0.0
    %330 = vmatprep.subr.mxu0 0.0
    %331 = vmatpush2.msra.mxu0 0.0
    %332 = vmatprep.mubr.f32.mxu0 0.0
    %333 = vmatmul.mubr.f32.gmra.mxu0 %v266
    %v334 = vpop.f32.mrf.mxu0
    %v335 = vadd.f32 0.0, %v334
    %v336 = vpop.f32.mrf.mxu0
    %337 = vdwg.mxu0
    %v338 = vadd.f32 %v265, %v335
    %v339 = vmul.f32 %v338, 0.5
    %v340 = vtanh.pop %v339
    %v341 = vadd.f32 %v340, 1.0
    %v342 = vmul.f32 %v341, 0.5
    %v343 = vtanh.pop %v338
    %v344 = vmul.f32 %v342, %v251
    %346 = vrot.lane.b32.xlu0 %v343, 64
    %v347 = vpop.permute.xlu0 %346
    %v349 = vmul.f32 %v342, %v347
    %351 = vrot.lane.b32.xlu0 %v349, 32
    %v352 = vpop.permute.xlu0 %351
    %v354 = vadd.f32 %v344, %v352
    %v355 = vtanh.pop %v354
    %357 = vrot.lane.b32.xlu0 %v355, 64
    %v358 = vpop.permute.xlu0 %357
    %v360 = vmul.f32 %v342, %v358
    %362 = vrot.lane.b32.xlu0 %v360, 32
    %v363 = vpop.permute.xlu0 %362
    %s365 = scalar_lea.vmem [#allocation9], 4
    %366 = vst.msk [vmem:[%s365] sm:$0x3] %vm159, %v363
    %s367 = scalar_lea.vmem [#allocation4], 6
    %v368 = vld [vmem:[%s367] sm:$0x3]
    %v369 = vsel %vm54, %v363, 0
    %371 = vmatprep.subr.mxu0 0.0
    %372 = vmatpush1.msra.mxu0 0.0
    %373 = vmatprep.subr.mxu0 0.0
    %374 = vmatpush1.msra.mxu0 0.0
    %375 = vmatprep.subr.mxu0 0.0
    %376 = vmatpush1.msra.mxu0 0.0
    %377 = vmatprep.subr.mxu0 0.0
    %378 = vmatpush1.msra.mxu0 0.0
    %379 = vmatprep.subr.mxu0 0.0
    %380 = vmatpush1.msra.mxu0 0.0
    %381 = vmatprep.subr.mxu0 0.0
    %382 = vmatpush1.msra.mxu0 0.0
    %383 = vmatprep.subr.mxu0 0.0
    %384 = vmatpush1.msra.mxu0 0.0
    %385 = vmatprep.subr.mxu0 0.0
    %386 = vmatpush1.msra.mxu0 0.0
    %387 = vmatprep.subr.mxu0 0.0
    %388 = vmatpush1.msra.mxu0 0.0
    %389 = vmatprep.subr.mxu0 0.0
    %390 = vmatpush1.msra.mxu0 0.0
    %391 = vmatprep.subr.mxu0 0.0
    %392 = vmatpush1.msra.mxu0 0.0
    %393 = vmatprep.subr.mxu0 0.0
    %394 = vmatpush1.msra.mxu0 0.0
    %395 = vmatprep.subr.mxu0 0.0
    %396 = vmatpush1.msra.mxu0 %v50
    %397 = vmatprep.subr.mxu0 0.0
    %398 = vmatpush1.msra.mxu0 %v49
    %399 = vmatprep.subr.mxu0 0.0
    %400 = vmatpush1.msra.mxu0 %v48
    %401 = vmatprep.subr.mxu0 0.0
    %402 = vmatpush1.msra.mxu0 %v47
    %403 = vmatprep.subr.mxu0 0.0
    %404 = vmatpush2.msra.mxu0 0.0
    %405 = vmatprep.subr.mxu0 0.0
    %406 = vmatpush2.msra.mxu0 0.0
    %407 = vmatprep.subr.mxu0 0.0
    %408 = vmatpush2.msra.mxu0 0.0
    %409 = vmatprep.subr.mxu0 0.0
    %410 = vmatpush2.msra.mxu0 0.0
    %411 = vmatprep.subr.mxu0 0.0
    %412 = vmatpush2.msra.mxu0 0.0
    %413 = vmatprep.subr.mxu0 0.0
    %414 = vmatpush2.msra.mxu0 0.0
    %415 = vmatprep.subr.mxu0 0.0
    %416 = vmatpush2.msra.mxu0 0.0
    %417 = vmatprep.subr.mxu0 0.0
    %418 = vmatpush2.msra.mxu0 0.0
    %419 = vmatprep.subr.mxu0 0.0
    %420 = vmatpush2.msra.mxu0 0.0
    %421 = vmatprep.subr.mxu0 0.0
    %422 = vmatpush2.msra.mxu0 0.0
    %423 = vmatprep.subr.mxu0 0.0
    %424 = vmatpush2.msra.mxu0 0.0
    %425 = vmatprep.subr.mxu0 0.0
    %426 = vmatpush2.msra.mxu0 0.0
    %427 = vmatprep.subr.mxu0 0.0
    %428 = vmatpush2.msra.mxu0 0.0
    %429 = vmatprep.subr.mxu0 0.0
    %430 = vmatpush2.msra.mxu0 0.0
    %431 = vmatprep.subr.mxu0 0.0
    %432 = vmatpush2.msra.mxu0 0.0
    %433 = vmatprep.subr.mxu0 0.0
    %434 = vmatpush2.msra.mxu0 0.0
    %435 = vmatprep.mubr.f32.mxu0 0.0
    %436 = vmatmul.mubr.f32.gmra.mxu0 %v369
    %v437 = vpop.f32.mrf.mxu0
    %v438 = vadd.f32 0.0, %v437
    %v439 = vpop.f32.mrf.mxu0
    %440 = vdwg.mxu0
    %v441 = vadd.f32 %v368, %v438
    %v442 = vmul.f32 %v441, 0.5
    %v443 = vtanh.pop %v442
    %v444 = vadd.f32 %v443, 1.0
    %v445 = vmul.f32 %v444, 0.5
    %v446 = vtanh.pop %v441
    %v447 = vmul.f32 %v445, %v354
    %449 = vrot.lane.b32.xlu0 %v446, 64
    %v450 = vpop.permute.xlu0 %449
    %v452 = vmul.f32 %v445, %v450
    %454 = vrot.lane.b32.xlu0 %v452, 32
    %v455 = vpop.permute.xlu0 %454
    %v457 = vadd.f32 %v447, %v455
    %v458 = vtanh.pop %v457
    %460 = vrot.lane.b32.xlu0 %v458, 64
    %v461 = vpop.permute.xlu0 %460
    %v463 = vmul.f32 %v445, %v461
    %465 = vrot.lane.b32.xlu0 %v463, 32
    %v466 = vpop.permute.xlu0 %465
    %s468 = scalar_lea.vmem [#allocation9], 6
    %469 = vst.msk [vmem:[%s468] sm:$0x3] %vm159, %v466
    %s470 = scalar_lea.vmem [#allocation4], 8
    %v471 = vld [vmem:[%s470] sm:$0x3]
    %v472 = vsel %vm54, %v466, 0
    %474 = vmatprep.subr.mxu0 0.0
    %475 = vmatpush1.msra.mxu0 0.0
    %476 = vmatprep.subr.mxu0 0.0
    %477 = vmatpush1.msra.mxu0 0.0
    %478 = vmatprep.subr.mxu0 0.0
    %479 = vmatpush1.msra.mxu0 0.0
    %480 = vmatprep.subr.mxu0 0.0
    %481 = vmatpush1.msra.mxu0 0.0
    %482 = vmatprep.subr.mxu0 0.0
    %483 = vmatpush1.msra.mxu0 0.0
    %484 = vmatprep.subr.mxu0 0.0
    %485 = vmatpush1.msra.mxu0 0.0
    %486 = vmatprep.subr.mxu0 0.0
    %487 = vmatpush1.msra.mxu0 0.0
    %488 = vmatprep.subr.mxu0 0.0
    %489 = vmatpush1.msra.mxu0 0.0
    %490 = vmatprep.subr.mxu0 0.0
    %491 = vmatpush1.msra.mxu0 0.0
    %492 = vmatprep.subr.mxu0 0.0
    %493 = vmatpush1.msra.mxu0 0.0
    %494 = vmatprep.subr.mxu0 0.0
    %495 = vmatpush1.msra.mxu0 0.0
    %496 = vmatprep.subr.mxu0 0.0
    %497 = vmatpush1.msra.mxu0 0.0
    %498 = vmatprep.subr.mxu0 0.0
    %499 = vmatpush1.msra.mxu0 %v50
    %500 = vmatprep.subr.mxu0 0.0
    %501 = vmatpush1.msra.mxu0 %v49
    %502 = vmatprep.subr.mxu0 0.0
    %503 = vmatpush1.msra.mxu0 %v48
    %504 = vmatprep.subr.mxu0 0.0
    %505 = vmatpush1.msra.mxu0 %v47
    %506 = vmatprep.subr.mxu0 0.0
    %507 = vmatpush2.msra.mxu0 0.0
    %508 = vmatprep.subr.mxu0 0.0
    %509 = vmatpush2.msra.mxu0 0.0
    %510 = vmatprep.subr.mxu0 0.0
    %511 = vmatpush2.msra.mxu0 0.0
    %512 = vmatprep.subr.mxu0 0.0
    %513 = vmatpush2.msra.mxu0 0.0
    %514 = vmatprep.subr.mxu0 0.0
    %515 = vmatpush2.msra.mxu0 0.0
    %516 = vmatprep.subr.mxu0 0.0
    %517 = vmatpush2.msra.mxu0 0.0
    %518 = vmatprep.subr.mxu0 0.0
    %519 = vmatpush2.msra.mxu0 0.0
    %520 = vmatprep.subr.mxu0 0.0
    %521 = vmatpush2.msra.mxu0 0.0
    %522 = vmatprep.subr.mxu0 0.0
    %523 = vmatpush2.msra.mxu0 0.0
    %524 = vmatprep.subr.mxu0 0.0
    %525 = vmatpush2.msra.mxu0 0.0
    %526 = vmatprep.subr.mxu0 0.0
    %527 = vmatpush2.msra.mxu0 0.0
    %528 = vmatprep.subr.mxu0 0.0
    %529 = vmatpush2.msra.mxu0 0.0
    %530 = vmatprep.subr.mxu0 0.0
    %531 = vmatpush2.msra.mxu0 0.0
    %532 = vmatprep.subr.mxu0 0.0
    %533 = vmatpush2.msra.mxu0 0.0
    %534 = vmatprep.subr.mxu0 0.0
    %535 = vmatpush2.msra.mxu0 0.0
    %536 = vmatprep.subr.mxu0 0.0
    %537 = vmatpush2.msra.mxu0 0.0
    %538 = vmatprep.mubr.f32.mxu0 0.0
    %539 = vmatmul.mubr.f32.gmra.mxu0 %v472
    %v540 = vpop.f32.mrf.mxu0
    %v541 = vadd.f32 0.0, %v540
    %v542 = vpop.f32.mrf.mxu0
    %543 = vdwg.mxu0
    %v544 = vadd.f32 %v471, %v541
    %v545 = vmul.f32 %v544, 0.5
    %v546 = vtanh.pop %v545
    %v547 = vadd.f32 %v546, 1.0
    %v548 = vmul.f32 %v547, 0.5
    %v549 = vtanh.pop %v544
    %v550 = vmul.f32 %v548, %v457
    %552 = vrot.lane.b32.xlu0 %v549, 64
    %v553 = vpop.permute.xlu0 %552
    %v555 = vmul.f32 %v548, %v553
    %557 = vrot.lane.b32.xlu0 %v555, 32
    %v558 = vpop.permute.xlu0 %557
    %v560 = vadd.f32 %v550, %v558
    %v561 = vtanh.pop %v560
    %563 = vrot.lane.b32.xlu0 %v561, 64
    %v564 = vpop.permute.xlu0 %563
    %v566 = vmul.f32 %v548, %v564
    %568 = vrot.lane.b32.xlu0 %v566, 32
    %v569 = vpop.permute.xlu0 %568
    %s571 = scalar_lea.vmem [#allocation9], 8
    %572 = vst.msk [vmem:[%s571] sm:$0x3] %vm159, %v569
    %s573 = scalar_lea.vmem [#allocation4], 10
    %v574 = vld [vmem:[%s573] sm:$0x3]
    %v575 = vsel %vm54, %v569, 0
    %577 = vmatprep.subr.mxu0 0.0
    %578 = vmatpush1.msra.mxu0 0.0
    %579 = vmatprep.subr.mxu0 0.0
    %580 = vmatpush1.msra.mxu0 0.0
    %581 = vmatprep.subr.mxu0 0.0
    %582 = vmatpush1.msra.mxu0 0.0
    %583 = vmatprep.subr.mxu0 0.0
    %584 = vmatpush1.msra.mxu0 0.0
    %585 = vmatprep.subr.mxu0 0.0
    %586 = vmatpush1.msra.mxu0 0.0
    %587 = vmatprep.subr.mxu0 0.0
    %588 = vmatpush1.msra.mxu0 0.0
    %589 = vmatprep.subr.mxu0 0.0
    %590 = vmatpush1.msra.mxu0 0.0
    %591 = vmatprep.subr.mxu0 0.0
    %592 = vmatpush1.msra.mxu0 0.0
    %593 = vmatprep.subr.mxu0 0.0
    %594 = vmatpush1.msra.mxu0 0.0
    %595 = vmatprep.subr.mxu0 0.0
    %596 = vmatpush1.msra.mxu0 0.0
    %597 = vmatprep.subr.mxu0 0.0
    %598 = vmatpush1.msra.mxu0 0.0
    %599 = vmatprep.subr.mxu0 0.0
    %600 = vmatpush1.msra.mxu0 0.0
    %601 = vmatprep.subr.mxu0 0.0
    %602 = vmatpush1.msra.mxu0 %v50
    %603 = vmatprep.subr.mxu0 0.0
    %604 = vmatpush1.msra.mxu0 %v49
    %605 = vmatprep.subr.mxu0 0.0
    %606 = vmatpush1.msra.mxu0 %v48
    %607 = vmatprep.subr.mxu0 0.0
    %608 = vmatpush1.msra.mxu0 %v47
    %609 = vmatprep.subr.mxu0 0.0
    %610 = vmatpush2.msra.mxu0 0.0
    %611 = vmatprep.subr.mxu0 0.0
    %612 = vmatpush2.msra.mxu0 0.0
    %613 = vmatprep.subr.mxu0 0.0
    %614 = vmatpush2.msra.mxu0 0.0
    %615 = vmatprep.subr.mxu0 0.0
    %616 = vmatpush2.msra.mxu0 0.0
    %617 = vmatprep.subr.mxu0 0.0
    %618 = vmatpush2.msra.mxu0 0.0
    %619 = vmatprep.subr.mxu0 0.0
    %620 = vmatpush2.msra.mxu0 0.0
    %621 = vmatprep.subr.mxu0 0.0
    %622 = vmatpush2.msra.mxu0 0.0
    %623 = vmatprep.subr.mxu0 0.0
    %624 = vmatpush2.msra.mxu0 0.0
    %625 = vmatprep.subr.mxu0 0.0
    %626 = vmatpush2.msra.mxu0 0.0
    %627 = vmatprep.subr.mxu0 0.0
    %628 = vmatpush2.msra.mxu0 0.0
    %629 = vmatprep.subr.mxu0 0.0
    %630 = vmatpush2.msra.mxu0 0.0
    %631 = vmatprep.subr.mxu0 0.0
    %632 = vmatpush2.msra.mxu0 0.0
    %633 = vmatprep.subr.mxu0 0.0
    %634 = vmatpush2.msra.mxu0 0.0
    %635 = vmatprep.subr.mxu0 0.0
    %636 = vmatpush2.msra.mxu0 0.0
    %637 = vmatprep.subr.mxu0 0.0
    %638 = vmatpush2.msra.mxu0 0.0
    %639 = vmatprep.subr.mxu0 0.0
    %640 = vmatpush2.msra.mxu0 0.0
    %641 = vmatprep.mubr.f32.mxu0 0.0
    %642 = vmatmul.mubr.f32.gmra.mxu0 %v575
    %v643 = vpop.f32.mrf.mxu0
    %v644 = vadd.f32 0.0, %v643
    %v645 = vpop.f32.mrf.mxu0
    %646 = vdwg.mxu0
    %v647 = vadd.f32 %v574, %v644
    %v648 = vmul.f32 %v647, 0.5
    %v649 = vtanh.pop %v648
    %v650 = vadd.f32 %v649, 1.0
    %v651 = vmul.f32 %v650, 0.5
    %v652 = vtanh.pop %v647
    %v653 = vmul.f32 %v651, %v560
    %655 = vrot.lane.b32.xlu0 %v652, 64
    %v656 = vpop.permute.xlu0 %655
    %v658 = vmul.f32 %v651, %v656
    %660 = vrot.lane.b32.xlu0 %v658, 32
    %v661 = vpop.permute.xlu0 %660
    %v663 = vadd.f32 %v653, %v661
    %v664 = vtanh.pop %v663
    %666 = vrot.lane.b32.xlu0 %v664, 64
    %v667 = vpop.permute.xlu0 %666
    %v669 = vmul.f32 %v651, %v667
    %671 = vrot.lane.b32.xlu0 %v669, 32
    %v672 = vpop.permute.xlu0 %671
    %s674 = scalar_lea.vmem [#allocation9], 10
    %675 = vst.msk [vmem:[%s674] sm:$0x3] %vm159, %v672
    %s676 = scalar_lea.vmem [#allocation4], 12
    %v677 = vld [vmem:[%s676] sm:$0x3]
    %v678 = vsel %vm54, %v672, 0
    %680 = vmatprep.subr.mxu0 0.0
    %681 = vmatpush1.msra.mxu0 0.0
    %682 = vmatprep.subr.mxu0 0.0
    %683 = vmatpush1.msra.mxu0 0.0
    %684 = vmatprep.subr.mxu0 0.0
    %685 = vmatpush1.msra.mxu0 0.0
    %686 = vmatprep.subr.mxu0 0.0
    %687 = vmatpush1.msra.mxu0 0.0
    %688 = vmatprep.subr.mxu0 0.0
    %689 = vmatpush1.msra.mxu0 0.0
    %690 = vmatprep.subr.mxu0 0.0
    %691 = vmatpush1.msra.mxu0 0.0
    %692 = vmatprep.subr.mxu0 0.0
    %693 = vmatpush1.msra.mxu0 0.0
    %694 = vmatprep.subr.mxu0 0.0
    %695 = vmatpush1.msra.mxu0 0.0
    %696 = vmatprep.subr.mxu0 0.0
    %697 = vmatpush1.msra.mxu0 0.0
    %698 = vmatprep.subr.mxu0 0.0
    %699 = vmatpush1.msra.mxu0 0.0
    %700 = vmatprep.subr.mxu0 0.0
    %701 = vmatpush1.msra.mxu0 0.0
    %702 = vmatprep.subr.mxu0 0.0
    %703 = vmatpush1.msra.mxu0 0.0
    %704 = vmatprep.subr.mxu0 0.0
    %705 = vmatpush1.msra.mxu0 %v50
    %706 = vmatprep.subr.mxu0 0.0
    %707 = vmatpush1.msra.mxu0 %v49
    %708 = vmatprep.subr.mxu0 0.0
    %709 = vmatpush1.msra.mxu0 %v48
    %710 = vmatprep.subr.mxu0 0.0
    %711 = vmatpush1.msra.mxu0 %v47
    %712 = vmatprep.subr.mxu0 0.0
    %713 = vmatpush2.msra.mxu0 0.0
    %714 = vmatprep.subr.mxu0 0.0
    %715 = vmatpush2.msra.mxu0 0.0
    %716 = vmatprep.subr.mxu0 0.0
    %717 = vmatpush2.msra.mxu0 0.0
    %718 = vmatprep.subr.mxu0 0.0
    %719 = vmatpush2.msra.mxu0 0.0
    %720 = vmatprep.subr.mxu0 0.0
    %721 = vmatpush2.msra.mxu0 0.0
    %722 = vmatprep.subr.mxu0 0.0
    %723 = vmatpush2.msra.mxu0 0.0
    %724 = vmatprep.subr.mxu0 0.0
    %725 = vmatpush2.msra.mxu0 0.0
    %726 = vmatprep.subr.mxu0 0.0
    %727 = vmatpush2.msra.mxu0 0.0
    %728 = vmatprep.subr.mxu0 0.0
    %729 = vmatpush2.msra.mxu0 0.0
    %730 = vmatprep.subr.mxu0 0.0
    %731 = vmatpush2.msra.mxu0 0.0
    %732 = vmatprep.subr.mxu0 0.0
    %733 = vmatpush2.msra.mxu0 0.0
    %734 = vmatprep.subr.mxu0 0.0
    %735 = vmatpush2.msra.mxu0 0.0
    %736 = vmatprep.subr.mxu0 0.0
    %737 = vmatpush2.msra.mxu0 0.0
    %738 = vmatprep.subr.mxu0 0.0
    %739 = vmatpush2.msra.mxu0 0.0
    %740 = vmatprep.subr.mxu0 0.0
    %741 = vmatpush2.msra.mxu0 0.0
    %742 = vmatprep.subr.mxu0 0.0
    %743 = vmatpush2.msra.mxu0 0.0
    %744 = vmatprep.mubr.f32.mxu0 0.0
    %745 = vmatmul.mubr.f32.gmra.mxu0 %v678
    %v746 = vpop.f32.mrf.mxu0
    %v747 = vadd.f32 0.0, %v746
    %v748 = vpop.f32.mrf.mxu0
    %749 = vdwg.mxu0
    %v750 = vadd.f32 %v677, %v747
    %v751 = vmul.f32 %v750, 0.5
    %v752 = vtanh.pop %v751
    %v753 = vadd.f32 %v752, 1.0
    %v754 = vmul.f32 %v753, 0.5
    %v755 = vtanh.pop %v750
    %v756 = vmul.f32 %v754, %v663
    %758 = vrot.lane.b32.xlu0 %v755, 64
    %v759 = vpop.permute.xlu0 %758
    %v761 = vmul.f32 %v754, %v759
    %763 = vrot.lane.b32.xlu0 %v761, 32
    %v764 = vpop.permute.xlu0 %763
    %v766 = vadd.f32 %v756, %v764
    %v767 = vtanh.pop %v766
    %769 = vrot.lane.b32.xlu0 %v767, 64
    %v770 = vpop.permute.xlu0 %769
    %v772 = vmul.f32 %v754, %v770
    %774 = vrot.lane.b32.xlu0 %v772, 32
    %v775 = vpop.permute.xlu0 %774
    %s777 = scalar_lea.vmem [#allocation9], 12
    %778 = vst.msk [vmem:[%s777] sm:$0x3] %vm159, %v775
    %s779 = scalar_lea.vmem [#allocation4], 14
    %v780 = vld [vmem:[%s779] sm:$0x3]
    %v781 = vsel %vm54, %v775, 0
    %783 = vmatprep.subr.mxu0 0.0
    %784 = vmatpush1.msra.mxu0 0.0
    %785 = vmatprep.subr.mxu0 0.0
    %786 = vmatpush1.msra.mxu0 0.0
    %787 = vmatprep.subr.mxu0 0.0
    %788 = vmatpush1.msra.mxu0 0.0
    %789 = vmatprep.subr.mxu0 0.0
    %790 = vmatpush1.msra.mxu0 0.0
    %791 = vmatprep.subr.mxu0 0.0
    %792 = vmatpush1.msra.mxu0 0.0
    %793 = vmatprep.subr.mxu0 0.0
    %794 = vmatpush1.msra.mxu0 0.0
    %795 = vmatprep.subr.mxu0 0.0
    %796 = vmatpush1.msra.mxu0 0.0
    %797 = vmatprep.subr.mxu0 0.0
    %798 = vmatpush1.msra.mxu0 0.0
    %799 = vmatprep.subr.mxu0 0.0
    %800 = vmatpush1.msra.mxu0 0.0
    %801 = vmatprep.subr.mxu0 0.0
    %802 = vmatpush1.msra.mxu0 0.0
    %803 = vmatprep.subr.mxu0 0.0
    %804 = vmatpush1.msra.mxu0 0.0
    %805 = vmatprep.subr.mxu0 0.0
    %806 = vmatpush1.msra.mxu0 0.0
    %807 = vmatprep.subr.mxu0 0.0
    %808 = vmatpush1.msra.mxu0 %v50
    %809 = vmatprep.subr.mxu0 0.0
    %810 = vmatpush1.msra.mxu0 %v49
    %811 = vmatprep.subr.mxu0 0.0
    %812 = vmatpush1.msra.mxu0 %v48
    %813 = vmatprep.subr.mxu0 0.0
    %814 = vmatpush1.msra.mxu0 %v47
    %815 = vmatprep.subr.mxu0 0.0
    %816 = vmatpush2.msra.mxu0 0.0
    %817 = vmatprep.subr.mxu0 0.0
    %818 = vmatpush2.msra.mxu0 0.0
    %819 = vmatprep.subr.mxu0 0.0
    %820 = vmatpush2.msra.mxu0 0.0
    %821 = vmatprep.subr.mxu0 0.0
    %822 = vmatpush2.msra.mxu0 0.0
    %823 = vmatprep.subr.mxu0 0.0
    %824 = vmatpush2.msra.mxu0 0.0
    %825 = vmatprep.subr.mxu0 0.0
    %826 = vmatpush2.msra.mxu0 0.0
    %827 = vmatprep.subr.mxu0 0.0
    %828 = vmatpush2.msra.mxu0 0.0
    %829 = vmatprep.subr.mxu0 0.0
    %830 = vmatpush2.msra.mxu0 0.0
    %831 = vmatprep.subr.mxu0 0.0
    %832 = vmatpush2.msra.mxu0 0.0
    %833 = vmatprep.subr.mxu0 0.0
    %834 = vmatpush2.msra.mxu0 0.0
    %835 = vmatprep.subr.mxu0 0.0
    %836 = vmatpush2.msra.mxu0 0.0
    %837 = vmatprep.subr.mxu0 0.0
    %838 = vmatpush2.msra.mxu0 0.0
    %839 = vmatprep.subr.mxu0 0.0
    %840 = vmatpush2.msra.mxu0 0.0
    %841 = vmatprep.subr.mxu0 0.0
    %842 = vmatpush2.msra.mxu0 0.0
    %843 = vmatprep.subr.mxu0 0.0
    %844 = vmatpush2.msra.mxu0 0.0
    %845 = vmatprep.subr.mxu0 0.0
    %846 = vmatpush2.msra.mxu0 0.0
    %847 = vmatprep.mubr.f32.mxu0 0.0
    %848 = vmatmul.mubr.f32.gmra.mxu0 %v781
    %v849 = vpop.f32.mrf.mxu0
    %v850 = vadd.f32 0.0, %v849
    %v851 = vpop.f32.mrf.mxu0
    %852 = vdwg.mxu0
    %v853 = vadd.f32 %v780, %v850
    %v854 = vmul.f32 %v853, 0.5
    %v855 = vtanh.pop %v854
    %v856 = vadd.f32 %v855, 1.0
    %v857 = vmul.f32 %v856, 0.5
    %v858 = vtanh.pop %v853
    %v859 = vmul.f32 %v857, %v766
    %861 = vrot.lane.b32.xlu0 %v858, 64
    %v862 = vpop.permute.xlu0 %861
    %v864 = vmul.f32 %v857, %v862
    %866 = vrot.lane.b32.xlu0 %v864, 32
    %v867 = vpop.permute.xlu0 %866
    %v869 = vadd.f32 %v859, %v867
    %v870 = vtanh.pop %v869
    %872 = vrot.lane.b32.xlu0 %v870, 64
    %v873 = vpop.permute.xlu0 %872
    %v875 = vmul.f32 %v857, %v873
    %877 = vrot.lane.b32.xlu0 %v875, 32
    %v878 = vpop.permute.xlu0 %877
    %s880 = scalar_lea.vmem [#allocation9], 14
    %881 = vst.msk [vmem:[%s880] sm:$0x3] %vm159, %v878
    %882 = vst.msk [vmem:[#allocation2] sm:$0x3] %vm159, %v878
    %884 = vrot.lane.b32.xlu0 %v869, 96
    %v885 = vpop.permute.xlu0 %884
    %887 = vst.msk [vmem:[#allocation3] sm:$0x3] %vm159, %v885
    // Predicated region
    $region22: #{tpu_custom_call.1} parent=1 // pred_check
      _
    $region23: #{tpu_custom_call.1} parent=1 // pred_check_branch
      %889 = sbr.rel (0) target = $region25
    $region24: #{tpu_custom_call.1} parent=1 // pred_region
      %s891 = ssub.s32 256, 256
      %892 = vsyncadd [#allocation6], %s891
      %s893 = sshll.u32 [#allocation9], 4
      %s894 = int_to_ptr.vmem [resolvable:$true] %s893
      %899 = dma.vmem_to_hbm [thread:$0]  %s894, 256, %s2, [#allocation6], 32, 32, 2
    $region25: #{tpu_custom_call.1} parent=1 // pred_fallthru
      _
    // Predicated region
    $region26: #{tpu_custom_call.1} parent=1 // pred_check
      _
    $region27: #{tpu_custom_call.1} parent=1 // pred_check_branch
      %901 = sbr.rel (0) target = $region29
    $region28: #{tpu_custom_call.1} parent=1 // pred_region
      %902 = dma.done [#allocation6], 256
    $region29: #{tpu_custom_call.1} parent=1 // pred_fallthru
      _
    %903 = vsyncpa [#allocation5], 1
    %904 = vsyncpa [#allocation8], 1
    %905 = vsyncpa [#allocation6], 1

</llo_original>
